<compile_context>
chip_gen: v5e
topology: v5e:2x2
jax: 0.10.0
libtpu: 0.0.40
codegen_flags: <defaults>
</compile_context>

<pallas_src>
import jax
import jax.numpy as jnp
from jax.experimental import pallas as pl
from jax.experimental.pallas import tpu as pltpu

STATE_DIM = 8    # LunarLander-v3 observation_space.shape[0]
ACTION_DIM = 4   # LunarLander-v3 (discrete) action_space.n
H1 = 64
H2 = 32

# Batch rows live in the 128-lane axis; 8192 is a multiple of 128/256 (MXU widths),
# amortizes per-step overhead, and keeps double-buffered streams + activations far
# under every generation's scoped-VMEM default.
TILE_B = 8192


def _round_up(n, m):
    return ((n + m - 1) // m) * m


def _policy_kernel(x_ref, w1_ref, b1_ref, w2_ref, b2_ref, w3_ref, b3_ref, out_ref):
    # x: (STATE_DIM, tb) float32, batch in lanes (lane-dense).
    x = x_ref[...]

    # fc1 + ReLU: (64,8)@(8,tb) -> (64,tb); f32 MXU accumulation, bias/ReLU on VPU.
    h1 = jnp.dot(w1_ref[...], x, preferred_element_type=jnp.float32)
    h1 = jnp.maximum(h1 + b1_ref[...], 0.0)                      # + (64,1)

    # fc2 + ReLU: (32,64)@(64,tb) -> (32,tb)
    h2 = jnp.dot(w2_ref[...], h1, preferred_element_type=jnp.float32)
    h2 = jnp.maximum(h2 + b2_ref[...], 0.0)                      # + (32,1)

    # action_head: (4,32)@(32,tb) -> (4,tb)
    logits = jnp.dot(w3_ref[...], h2, preferred_element_type=jnp.float32)
    logits = logits + b3_ref[...]                                # + (4,1)

    # Numerically stable softmax over the action axis (sublane axis, size 4).
    # Exact divide so each batch column sums to 1 to f32 rounding.
    m = jnp.max(logits, axis=0, keepdims=True)                   # (1, tb)
    e = jnp.exp(logits - m)                                      # (4, tb)
    s = jnp.sum(e, axis=0, keepdims=True)                        # (1, tb)
    out_ref[...] = e / s


def policy_net_forward(x, params, *, tile_b=TILE_B):
    """x: (B, STATE_DIM) float32.  Returns (B, ACTION_DIM) action probabilities.

    params: dict with w1 (64,8), b1 (64,1), w2 (32,64), b2 (32,1),
            w3 (4,32), b3 (4,1)  (PyTorch (out,in) weight layout).
    """
    w1, b1 = params["w1"], params["b1"]
    w2, b2 = params["w2"], params["b2"]
    w3, b3 = params["w3"], params["b3"]

    B = x.shape[0]

    # Batch is the lane axis -> round the tile to the 128-lane boundary; don't
    # inflate small inference batches to TILE_B.
    tb = min(tile_b, _round_up(max(B, 1), 128))
    # v7x: keep >=2 grid steps for non-trivial batches so both TensorCores get work.
    if B >= 2 * 128:
        tb = min(tb, _round_up(pl.cdiv(B, 2), 128))
    num_tiles = pl.cdiv(B, tb)
    B_pad = num_tiles * tb

    # Feature-major (batch-in-lanes) input; tiny XLA transpose in the wrapper.
    xt = x.T                                                     # (STATE_DIM, B)
    if B_pad != B:
        xt = jnp.pad(xt, ((0, 0), (0, B_pad - B)))               # pad tail columns

    # Weights / biases: constant block index -> stay VMEM-resident across steps.
    resident = lambda arr: pl.BlockSpec(arr.shape, lambda i: (0, 0))

    out = pl.pallas_call(
        _policy_kernel,
        out_shape=jax.ShapeDtypeStruct((ACTION_DIM, B_pad), jnp.float32),
        grid=(num_tiles,),
        in_specs=[
            pl.BlockSpec((STATE_DIM, tb), lambda i: (0, i)),     # streamed x tiles
            resident(w1), resident(b1),
            resident(w2), resident(b2),
            resident(w3), resident(b3),
        ],
        out_specs=pl.BlockSpec((ACTION_DIM, tb), lambda i: (0, i)),  # lane-dense out
        compiler_params=pltpu.CompilerParams(
            # batch axis is independent -> shard across v7x's 2 TensorCores
            dimension_semantics=("parallel",)),
    )(xt, w1, b1, w2, b2, w3, b3)

    # Back to PyTorch layout (B, ACTION_DIM); padded columns sliced off.
    return out[:, :B].T


def init_params(key):
    """Deterministic init mirroring nn.Linear's U(-1/sqrt(fan_in), +1/sqrt(fan_in)).
    Weights kept in PyTorch (out_features, in_features) layout; biases (out, 1)."""
    ks = jax.random.split(key, 6)

    def linear(kw, kb, fan_in, fan_out):
        bound = 1.0 / jnp.sqrt(jnp.float32(fan_in))
        w = jax.random.uniform(kw, (fan_out, fan_in), jnp.float32, -bound, bound)
        b = jax.random.uniform(kb, (fan_out, 1), jnp.float32, -bound, bound)
        return w, b

    w1, b1 = linear(ks[0], ks[1], STATE_DIM, H1)
    w2, b2 = linear(ks[2], ks[3], H1, H2)
    w3, b3 = linear(ks[4], ks[5], H2, ACTION_DIM)
    return {"w1": w1, "b1": b1, "w2": w2, "b2": b2, "w3": w3, "b3": b3}


def _ref_forward(x, p):
    """Pure-JAX f32 reference (matches the PyTorch module's forward)."""
    h1 = jnp.maximum(x @ p["w1"].T + p["b1"][:, 0], 0.0)
    h2 = jnp.maximum(h1 @ p["w2"].T + p["b2"][:, 0], 0.0)
    return jax.nn.softmax(h2 @ p["w3"].T + p["b3"][:, 0], axis=-1)


# TODO(synk): sample_action / get_best_action / log_prob (Categorical sampling,
# argmax, log-prob) are thin host-side ops on these probabilities and are left to
# plain JAX outside the kernel.

if __name__ == "__main__":
    key = jax.random.PRNGKey(0)
    pkey, xkey, xkey2 = jax.random.split(key, 3)

    params = init_params(pkey)

    # Small per-env-step batch (single grid step, shrunk 128-lane tile).
    batch = 8
    x = jax.random.normal(xkey, (batch, STATE_DIM), jnp.float32)
    probs = jax.block_until_ready(policy_net_forward(x, params))

    assert probs.shape == (batch, ACTION_DIM)
    row_sums = jnp.sum(probs, axis=-1)
    assert bool(jnp.all(jnp.abs(row_sums - 1.0) < 1e-3))   # exact divide -> ~f32 exact
    ref = _ref_forward(x, params)
    # Loose-ish tol: the pure-JAX reference uses default matmul precision on TPU.
    assert bool(jnp.max(jnp.abs(probs - ref)) < 2e-2)

    # Larger rollout-scoring batch (exercises tail padding + 2 grid steps).
    batch2 = 1000
    x2 = jax.random.normal(xkey2, (batch2, STATE_DIM), jnp.float32)
    probs2 = jax.block_until_ready(policy_net_forward(x2, params))

    assert probs2.shape == (batch2, ACTION_DIM)
    row_sums2 = jnp.sum(probs2, axis=-1)
    assert bool(jnp.all(jnp.abs(row_sums2 - 1.0) < 1e-3))
    ref2 = _ref_forward(x2, params)
    assert bool(jnp.max(jnp.abs(probs2 - ref2)) < 2e-2)

    print("KERNEL_OK")
</pallas_src>

<mosaic_0001>
module attributes {stable_mosaic.version = 11 : i64} {
  func.func @_policy_kernel(%arg0: i32, %arg1: memref<8x128xf32, #tpu.memory_space<vmem>>, %arg2: memref<64x8xf32, #tpu.memory_space<vmem>>, %arg3: memref<64x1xf32, #tpu.memory_space<vmem>>, %arg4: memref<32x64xf32, #tpu.memory_space<vmem>>, %arg5: memref<32x1xf32, #tpu.memory_space<vmem>>, %arg6: memref<4x32xf32, #tpu.memory_space<vmem>>, %arg7: memref<4x1xf32, #tpu.memory_space<vmem>>, %arg8: memref<4x128xf32, #tpu.memory_space<vmem>>) attributes {dimension_semantics = [#tpu.dimension_semantics<parallel>], iteration_bounds = array<i64: 1>, scalar_prefetch = 0 : i64, scratch_operands = 0 : i64, tpu.core_type = #tpu.core_type<tc>, window_params = [{transform_indices = @transform_0, window_bounds = array<i64: 8, 128>}, {pipeline_mode = #tpu.pipeline_mode<synchronous>, transform_indices = @transform_1, window_bounds = array<i64: 64, 8>}, {pipeline_mode = #tpu.pipeline_mode<synchronous>, transform_indices = @transform_2, window_bounds = array<i64: 64, 1>}, {pipeline_mode = #tpu.pipeline_mode<synchronous>, transform_indices = @transform_3, window_bounds = array<i64: 32, 64>}, {pipeline_mode = #tpu.pipeline_mode<synchronous>, transform_indices = @transform_4, window_bounds = array<i64: 32, 1>}, {pipeline_mode = #tpu.pipeline_mode<synchronous>, transform_indices = @transform_5, window_bounds = array<i64: 4, 32>}, {pipeline_mode = #tpu.pipeline_mode<synchronous>, transform_indices = @transform_6, window_bounds = array<i64: 4, 1>}, {transform_indices = @transform_7, window_bounds = array<i64: 4, 128>}]} {
    %c0 = arith.constant 0 : index
    %c0_0 = arith.constant 0 : index
    %0 = vector.load %arg1[%c0, %c0_0] : memref<8x128xf32, #tpu.memory_space<vmem>>, vector<8x128xf32>
    %c0_1 = arith.constant 0 : index
    %c0_2 = arith.constant 0 : index
    %1 = vector.load %arg2[%c0_1, %c0_2] : memref<64x8xf32, #tpu.memory_space<vmem>>, vector<64x8xf32>
    %cst = arith.constant dense<0.000000e+00> : vector<64x128xf32>
    %2 = tpu.matmul %1, %0, %cst {dimension_numbers = #tpu.dot_dimension_numbers<[1], [0], [0], [1], [0, 0, 1, 1], [], []>} : vector<64x8xf32>, vector<8x128xf32>, vector<64x128xf32> -> vector<64x128xf32>
    %c0_3 = arith.constant 0 : index
    %c0_4 = arith.constant 0 : index
    %3 = vector.load %arg3[%c0_3, %c0_4] : memref<64x1xf32, #tpu.memory_space<vmem>>, vector<64x1xf32>
    %4 = vector.broadcast %3 : vector<64x1xf32> to vector<64x128xf32>
    %5 = arith.addf %2, %4 : vector<64x128xf32>
    %cst_5 = arith.constant 0.000000e+00 : f32
    %6 = vector.broadcast %cst_5 : f32 to vector<64x128xf32>
    %7 = arith.maximumf %5, %6 : vector<64x128xf32>
    %c0_6 = arith.constant 0 : index
    %c0_7 = arith.constant 0 : index
    %8 = vector.load %arg4[%c0_6, %c0_7] : memref<32x64xf32, #tpu.memory_space<vmem>>, vector<32x64xf32>
    %cst_8 = arith.constant dense<0.000000e+00> : vector<32x128xf32>
    %9 = tpu.matmul %8, %7, %cst_8 {dimension_numbers = #tpu.dot_dimension_numbers<[1], [0], [0], [1], [0, 0, 1, 1], [], []>} : vector<32x64xf32>, vector<64x128xf32>, vector<32x128xf32> -> vector<32x128xf32>
    %c0_9 = arith.constant 0 : index
    %c0_10 = arith.constant 0 : index
    %10 = vector.load %arg5[%c0_9, %c0_10] : memref<32x1xf32, #tpu.memory_space<vmem>>, vector<32x1xf32>
    %11 = vector.broadcast %10 : vector<32x1xf32> to vector<32x128xf32>
    %12 = arith.addf %9, %11 : vector<32x128xf32>
    %cst_11 = arith.constant 0.000000e+00 : f32
    %13 = vector.broadcast %cst_11 : f32 to vector<32x128xf32>
    %14 = arith.maximumf %12, %13 : vector<32x128xf32>
    %c0_12 = arith.constant 0 : index
    %c0_13 = arith.constant 0 : index
    %15 = vector.load %arg6[%c0_12, %c0_13] : memref<4x32xf32, #tpu.memory_space<vmem>>, vector<4x32xf32>
    %cst_14 = arith.constant dense<0.000000e+00> : vector<4x128xf32>
    %16 = tpu.matmul %15, %14, %cst_14 {dimension_numbers = #tpu.dot_dimension_numbers<[1], [0], [0], [1], [0, 0, 1, 1], [], []>} : vector<4x32xf32>, vector<32x128xf32>, vector<4x128xf32> -> vector<4x128xf32>
    %c0_15 = arith.constant 0 : index
    %c0_16 = arith.constant 0 : index
    %17 = vector.load %arg7[%c0_15, %c0_16] : memref<4x1xf32, #tpu.memory_space<vmem>>, vector<4x1xf32>
    %18 = vector.broadcast %17 : vector<4x1xf32> to vector<4x128xf32>
    %19 = arith.addf %16, %18 : vector<4x128xf32>
    %cst_17 = arith.constant dense<0xFF800000> : vector<128xf32>
    %20 = vector.multi_reduction <maximumf>, %19, %cst_17 [0] : vector<4x128xf32> to vector<128xf32>
    %21 = vector.shape_cast %20 : vector<128xf32> to vector<1x128xf32>
    %22 = vector.broadcast %21 : vector<1x128xf32> to vector<4x128xf32>
    %23 = arith.subf %19, %22 : vector<4x128xf32>
    %24 = math.exp %23 : vector<4x128xf32>
    %cst_18 = arith.constant dense<0.000000e+00> : vector<128xf32>
    %25 = vector.multi_reduction <add>, %24, %cst_18 [0] : vector<4x128xf32> to vector<128xf32>
    %26 = vector.shape_cast %25 : vector<128xf32> to vector<1x128xf32>
    %27 = vector.broadcast %26 : vector<1x128xf32> to vector<4x128xf32>
    %28 = arith.divf %24, %27 : vector<4x128xf32>
    %c0_19 = arith.constant 0 : index
    %c0_20 = arith.constant 0 : index
    %29 = vector.load %arg8[%c0_19, %c0_20] : memref<4x128xf32, #tpu.memory_space<vmem>>, vector<4x128xf32>
    tpu.vector_store %arg8[%c0_19, %c0_20], %28 {strides = array<i32>} : memref<4x128xf32, #tpu.memory_space<vmem>>, vector<4x128xf32>,
    return
  }
  func.func @transform_0(%arg0: i32) -> (i32, i32) {
    %c0_i32 = arith.constant 0 : i32
    %c0_i32_0 = arith.constant 0 : i32
    return %c0_i32, %arg0 : i32, i32
  }
  func.func @transform_1(%arg0: i32) -> (i32, i32) {
    %c0_i32 = arith.constant 0 : i32
    %c0_i32_0 = arith.constant 0 : i32
    %c0_i32_1 = arith.constant 0 : i32
    return %c0_i32, %c0_i32_0 : i32, i32
  }
  func.func @transform_2(%arg0: i32) -> (i32, i32) {
    %c0_i32 = arith.constant 0 : i32
    %c0_i32_0 = arith.constant 0 : i32
    %c0_i32_1 = arith.constant 0 : i32
    return %c0_i32, %c0_i32_0 : i32, i32
  }
  func.func @transform_3(%arg0: i32) -> (i32, i32) {
    %c0_i32 = arith.constant 0 : i32
    %c0_i32_0 = arith.constant 0 : i32
    %c0_i32_1 = arith.constant 0 : i32
    return %c0_i32, %c0_i32_0 : i32, i32
  }
  func.func @transform_4(%arg0: i32) -> (i32, i32) {
    %c0_i32 = arith.constant 0 : i32
    %c0_i32_0 = arith.constant 0 : i32
    %c0_i32_1 = arith.constant 0 : i32
    return %c0_i32, %c0_i32_0 : i32, i32
  }
  func.func @transform_5(%arg0: i32) -> (i32, i32) {
    %c0_i32 = arith.constant 0 : i32
    %c0_i32_0 = arith.constant 0 : i32
    %c0_i32_1 = arith.constant 0 : i32
    return %c0_i32, %c0_i32_0 : i32, i32
  }
  func.func @transform_6(%arg0: i32) -> (i32, i32) {
    %c0_i32 = arith.constant 0 : i32
    %c0_i32_0 = arith.constant 0 : i32
    %c0_i32_1 = arith.constant 0 : i32
    return %c0_i32, %c0_i32_0 : i32, i32
  }
  func.func @transform_7(%arg0: i32) -> (i32, i32) {
    %c0_i32 = arith.constant 0 : i32
    %c0_i32_0 = arith.constant 0 : i32
    return %c0_i32, %arg0 : i32, i32
  }
}

</mosaic_0001>

<llo_original>
// kernel: tpu_custom_call.1
$region0: #{tpu_custom_call.1}
  #allocation0 [shape = 'u32[]', space=smem, size = 0x4, offset = 0x4, fixed_abs, tag = 'smem constant byte address 0x4 - core index']
  #allocation1 [shape = 'u32[72,128]{1,0:T(1,128)}', space=vmem, size = 0x9000, scoped, tag = 'internal scratch']
  %s0 = inlined_call_operand.vmem [shape: f32[8,128], index: 0, kind: input, shape index: {}]
  %s1 = inlined_call_operand.vmem [shape: f32[64,8], index: 1, kind: input, shape index: {}]
  %s2 = inlined_call_operand.vmem [shape: f32[64,1], index: 2, kind: input, shape index: {}]
  %s3 = inlined_call_operand.vmem [shape: f32[32,64], index: 3, kind: input, shape index: {}]
  %s4 = inlined_call_operand.vmem [shape: f32[32,1], index: 4, kind: input, shape index: {}]
  %s5 = inlined_call_operand.vmem [shape: f32[4,32], index: 5, kind: input, shape index: {}]
  %s6 = inlined_call_operand.vmem [shape: f32[4,1], index: 6, kind: input, shape index: {}]
  %s7 = inlined_call_operand.hbm [shape: f32[4,128], index: 7, kind: output, shape index: {}]
  %s8 = sld [smem:[#allocation0]]
  $region38: #{tpu_custom_call.1} parent=0
    _
  %s10 = ssub.s32 1, %s8
  %s11 = scalar_select 0, %s10, %s8
  $region1: #{tpu_custom_call.1} parent=0
    #allocation2 [shape = 'u8[2048]{0}', space=vmem, size = 0x800, scoped, tag = 'output window, operand 0, single buffered']
    #allocation3 [shape = 's32[1]{0}', space=sflag, size = 0x4, scoped, tag = 'scoped memory for tpu_custom_call.1']
    %12 = vsyncpa [#allocation3], 0
    // Predicated region
    $region2: #{tpu_custom_call.1} parent=1 // pred_check
      _
    $region3: #{tpu_custom_call.1} parent=1 // pred_check_branch
      %14 = sbr.rel (0) target = $region5
    $region4: #{tpu_custom_call.1} parent=1 // pred_region
      _
    $region5: #{tpu_custom_call.1} parent=1 // pred_fallthru
      _
    // Predicated region
    $region6: #{tpu_custom_call.1} parent=1 // pred_check
      _
    $region7: #{tpu_custom_call.1} parent=1 // pred_check_branch
      %16 = sbr.rel (0) target = $region9
    $region8: #{tpu_custom_call.1} parent=1 // pred_region
      _
    $region9: #{tpu_custom_call.1} parent=1 // pred_fallthru
      _
    // Predicated region
    $region10: #{tpu_custom_call.1} parent=1 // pred_check
      _
    $region11: #{tpu_custom_call.1} parent=1 // pred_check_branch
      %18 = sbr.rel (0) target = $region13
    $region12: #{tpu_custom_call.1} parent=1 // pred_region
      _
    $region13: #{tpu_custom_call.1} parent=1 // pred_fallthru
      _
    // Predicated region
    $region14: #{tpu_custom_call.1} parent=1 // pred_check
      _
    $region15: #{tpu_custom_call.1} parent=1 // pred_check_branch
      %20 = sbr.rel (0) target = $region17
    $region16: #{tpu_custom_call.1} parent=1 // pred_region
      _
    $region17: #{tpu_custom_call.1} parent=1 // pred_fallthru
      _
    // Predicated region
    $region18: #{tpu_custom_call.1} parent=1 // pred_check
      _
    $region19: #{tpu_custom_call.1} parent=1 // pred_check_branch
      %22 = sbr.rel (0) target = $region21
    $region20: #{tpu_custom_call.1} parent=1 // pred_region
      _
    $region21: #{tpu_custom_call.1} parent=1 // pred_fallthru
      _
    // Predicated region
    $region22: #{tpu_custom_call.1} parent=1 // pred_check
      _
    $region23: #{tpu_custom_call.1} parent=1 // pred_check_branch
      %24 = sbr.rel (0) target = $region25
    $region24: #{tpu_custom_call.1} parent=1 // pred_region
      _
    $region25: #{tpu_custom_call.1} parent=1 // pred_fallthru
      _
    // Predicated region
    $region26: #{tpu_custom_call.1} parent=1 // pred_check
      _
    $region27: #{tpu_custom_call.1} parent=1 // pred_check_branch
      %26 = sbr.rel (0) target = $region29
    $region28: #{tpu_custom_call.1} parent=1 // pred_region
      _
    $region29: #{tpu_custom_call.1} parent=1 // pred_fallthru
      _
    %v27 = vld [vmem:[%s0] sm:$0xff]
    %v28 = vld [vmem:[%s1] sm:$0xff]
    %v29 = vld [vmem:[%s1 + $0x8] sm:$0xff]
    %v30 = vld [vmem:[%s1 + $0x10] sm:$0xff]
    %v31 = vld [vmem:[%s1 + $0x18] sm:$0xff]
    %v32 = vld [vmem:[%s1 + $0x20] sm:$0xff]
    %v33 = vld [vmem:[%s1 + $0x28] sm:$0xff]
    %v34 = vld [vmem:[%s1 + $0x30] sm:$0xff]
    %v35 = vld [vmem:[%s1 + $0x38] sm:$0xff]
    %v36 = vld [vmem:[%s2] sm:$0xff]
    %v37 = vld [vmem:[%s2 + $0x8] sm:$0xff]
    %v38 = vld [vmem:[%s2 + $0x10] sm:$0xff]
    %v39 = vld [vmem:[%s2 + $0x18] sm:$0xff]
    %v40 = vld [vmem:[%s2 + $0x20] sm:$0xff]
    %v41 = vld [vmem:[%s2 + $0x28] sm:$0xff]
    %v42 = vld [vmem:[%s2 + $0x30] sm:$0xff]
    %v43 = vld [vmem:[%s2 + $0x38] sm:$0xff]
    %45 = vset.pattern.permute.xlu0 0
    %46 = vperm.xlu0 %45, %v36
    %v47 = vpop.permute.xlu0 %46
    %50 = vset.pattern.permute.xlu0 0
    %51 = vperm.xlu0 %50, %v37
    %v52 = vpop.permute.xlu0 %51
    %55 = vset.pattern.permute.xlu0 0
    %56 = vperm.xlu0 %55, %v38
    %v57 = vpop.permute.xlu0 %56
    %60 = vset.pattern.permute.xlu0 0
    %61 = vperm.xlu0 %60, %v39
    %v62 = vpop.permute.xlu0 %61
    %65 = vset.pattern.permute.xlu0 0
    %66 = vperm.xlu0 %65, %v40
    %v67 = vpop.permute.xlu0 %66
    %70 = vset.pattern.permute.xlu0 0
    %71 = vperm.xlu0 %70, %v41
    %v72 = vpop.permute.xlu0 %71
    %75 = vset.pattern.permute.xlu0 0
    %76 = vperm.xlu0 %75, %v42
    %v77 = vpop.permute.xlu0 %76
    %80 = vset.pattern.permute.xlu0 0
    %81 = vperm.xlu0 %80, %v43
    %v82 = vpop.permute.xlu0 %81
    %vm84 = vcmask 64512
    %v86 = vsel %vm84, %v28, 0
    %v89 = vsel %vm84, %v29, 0
    %v92 = vsel %vm84, %v30, 0
    %v95 = vsel %vm84, %v31, 0
    %v98 = vsel %vm84, %v32, 0
    %v101 = vsel %vm84, %v33, 0
    %v104 = vsel %vm84, %v34, 0
    %v107 = vsel %vm84, %v35, 0
    %109 = vmatpush.msra.mxu0 0.0
    %110 = vmatpush.msra.mxu0 0.0
    %111 = vmatpush.msra.mxu0 0.0
    %112 = vmatpush.msra.mxu0 0.0
    %113 = vmatpush.msra.mxu0 0.0
    %114 = vmatpush.msra.mxu0 0.0
    %115 = vmatpush.msra.mxu0 0.0
    %116 = vmatpush.msra.mxu0 0.0
    %117 = vmatpush.msra.mxu0 0.0
    %118 = vmatpush.msra.mxu0 0.0
    %119 = vmatpush.msra.mxu0 0.0
    %120 = vmatpush.msra.mxu0 0.0
    %121 = vmatpush.msra.mxu0 0.0
    %122 = vmatpush.msra.mxu0 0.0
    %123 = vmatpush.msra.mxu0 0.0
    %124 = vmatpush.msra.mxu0 %v27
    %125 = vmatmul.f32.gmra.mxu0 %v86
    %v126 = vpop.f32.mrf.mxu0
    %v127 = vadd.f32 %v47, %v126
    %128 = vmatmul.f32.gmra.mxu0 %v89
    %v129 = vpop.f32.mrf.mxu0
    %v130 = vadd.f32 %v52, %v129
    %131 = vmatmul.f32.gmra.mxu0 %v92
    %v132 = vpop.f32.mrf.mxu0
    %v133 = vadd.f32 %v57, %v132
    %134 = vmatmul.f32.gmra.mxu0 %v95
    %v135 = vpop.f32.mrf.mxu0
    %v136 = vadd.f32 %v62, %v135
    %137 = vmatmul.f32.gmra.mxu0 %v98
    %v138 = vpop.f32.mrf.mxu0
    %v139 = vadd.f32 %v67, %v138
    %140 = vmatmul.f32.gmra.mxu0 %v101
    %v141 = vpop.f32.mrf.mxu0
    %v142 = vadd.f32 %v72, %v141
    %143 = vmatmul.f32.gmra.mxu0 %v104
    %v144 = vpop.f32.mrf.mxu0
    %v145 = vadd.f32 %v77, %v144
    %146 = vmatmul.f32.gmra.mxu0 %v107
    %v147 = vpop.f32.mrf.mxu0
    %v148 = vadd.f32 %v82, %v147
    %149 = vdwg.mxu0
    %v150 = vmax.f32 %v127, 0.0
    %v151 = vmax.f32 %v130, 0.0
    %v152 = vmax.f32 %v133, 0.0
    %v153 = vmax.f32 %v136, 0.0
    %v154 = vmax.f32 %v139, 0.0
    %v155 = vmax.f32 %v142, 0.0
    %v156 = vmax.f32 %v145, 0.0
    %v157 = vmax.f32 %v148, 0.0
    %v158 = vld [vmem:[%s3] sm:$0xff]
    %v159 = vld [vmem:[%s3 + $0x8] sm:$0xff]
    %v160 = vld [vmem:[%s3 + $0x10] sm:$0xff]
    %v161 = vld [vmem:[%s3 + $0x18] sm:$0xff]
    %v162 = vld [vmem:[%s4] sm:$0xff]
    %v163 = vld [vmem:[%s4 + $0x8] sm:$0xff]
    %v164 = vld [vmem:[%s4 + $0x10] sm:$0xff]
    %v165 = vld [vmem:[%s4 + $0x18] sm:$0xff]
    %167 = vset.pattern.permute.xlu0 0
    %168 = vperm.xlu0 %167, %v162
    %v169 = vpop.permute.xlu0 %168
    %172 = vset.pattern.permute.xlu0 0
    %173 = vperm.xlu0 %172, %v163
    %v174 = vpop.permute.xlu0 %173
    %177 = vset.pattern.permute.xlu0 0
    %178 = vperm.xlu0 %177, %v164
    %v179 = vpop.permute.xlu0 %178
    %182 = vset.pattern.permute.xlu0 0
    %183 = vperm.xlu0 %182, %v165
    %v184 = vpop.permute.xlu0 %183
    %vm186 = vcmask 523264
    %v188 = vsel %vm186, %v158, 0
    %v191 = vsel %vm186, %v159, 0
    %v194 = vsel %vm186, %v160, 0
    %v197 = vsel %vm186, %v161, 0
    %199 = vmatpush.msra.mxu0 0.0
    %200 = vmatpush.msra.mxu0 0.0
    %201 = vmatpush.msra.mxu0 0.0
    %202 = vmatpush.msra.mxu0 0.0
    %203 = vmatpush.msra.mxu0 0.0
    %204 = vmatpush.msra.mxu0 0.0
    %205 = vmatpush.msra.mxu0 0.0
    %206 = vmatpush.msra.mxu0 0.0
    %207 = vmatpush.msra.mxu0 %v157
    %208 = vmatpush.msra.mxu0 %v156
    %209 = vmatpush.msra.mxu0 %v155
    %210 = vmatpush.msra.mxu0 %v154
    %211 = vmatpush.msra.mxu0 %v153
    %212 = vmatpush.msra.mxu0 %v152
    %213 = vmatpush.msra.mxu0 %v151
    %214 = vmatpush.msra.mxu0 %v150
    %215 = vmatmul.f32.gmra.mxu0 %v188
    %v216 = vpop.f32.mrf.mxu0
    %v217 = vadd.f32 %v169, %v216
    %218 = vmatmul.f32.gmra.mxu0 %v191
    %v219 = vpop.f32.mrf.mxu0
    %v220 = vadd.f32 %v174, %v219
    %221 = vmatmul.f32.gmra.mxu0 %v194
    %v222 = vpop.f32.mrf.mxu0
    %v223 = vadd.f32 %v179, %v222
    %224 = vmatmul.f32.gmra.mxu0 %v197
    %v225 = vpop.f32.mrf.mxu0
    %v226 = vadd.f32 %v184, %v225
    %227 = vdwg.mxu0
    %v228 = vmax.f32 %v217, 0.0
    %v229 = vmax.f32 %v220, 0.0
    %v230 = vmax.f32 %v223, 0.0
    %v231 = vmax.f32 %v226, 0.0
    %v232 = vld [vmem:[%s5] sm:$0xf]
    %v233 = vld [vmem:[%s6] sm:$0xf]
    %235 = vset.pattern.permute.xlu0 0
    %236 = vperm.xlu0 %235, %v233
    %v237 = vpop.permute.xlu0 %236
    %vm239 = vcmask 261120
    %v241 = vsel %vm239, %v232, 0
    %243 = vmatpush.msra.mxu0 0.0
    %244 = vmatpush.msra.mxu0 0.0
    %245 = vmatpush.msra.mxu0 0.0
    %246 = vmatpush.msra.mxu0 0.0
    %247 = vmatpush.msra.mxu0 0.0
    %248 = vmatpush.msra.mxu0 0.0
    %249 = vmatpush.msra.mxu0 0.0
    %250 = vmatpush.msra.mxu0 0.0
    %251 = vmatpush.msra.mxu0 0.0
    %252 = vmatpush.msra.mxu0 0.0
    %253 = vmatpush.msra.mxu0 0.0
    %254 = vmatpush.msra.mxu0 0.0
    %255 = vmatpush.msra.mxu0 %v231
    %256 = vmatpush.msra.mxu0 %v230
    %257 = vmatpush.msra.mxu0 %v229
    %258 = vmatpush.msra.mxu0 %v228
    %259 = vmatmul.f32.gmra.mxu0 %v241
    %v260 = vpop.f32.mrf.mxu0
    %v261 = vadd.f32 %v237, %v260
    %262 = vdwg.mxu0
    %vm263 = vcmask 1043456
    %v264 = vsel %vm263, %v261, -inf
    %v265 = vrot.slane %v264, 4
    %v266 = vmax.f32 %v264, %v265
    %v267 = vrot.slane %v266, 2
    %v268 = vmax.f32 %v266, %v267
    %v269 = vrot.slane %v268, 1
    %v270 = vmax.f32 %v268, %v269
    %v271 = vsub.f32 %v261, %v270
    %v272 = vmul.f32 %v271, 1.442695
    %v273 = vpow.pop %v272
    %v274 = vsel %vm263, %v273, 0.0
    %v275 = vrot.slane %v274, 4
    %v276 = vadd.f32 %v274, %v275
    %v277 = vrot.slane %v276, 2
    %v278 = vadd.f32 %v276, %v277
    %v279 = vrot.slane %v278, 1
    %v280 = vadd.f32 %v278, %v279
    %v281 = vrcp.pop %v280
    %v282 = vmul.f32 %v280, %v281
    %v283 = vsub.f32 1.0, %v282
    %v284 = vmul.f32 %v281, %v283
    %v285 = vadd.f32 %v281, %v284
    %vm286 = vweird.f32 %v280
    %vm287 = vweird.f32 %v281
    %vm288 = vmor %vm286, %vm287
    %v289 = vsel %vm288, %v281, %v285
    %v290 = vand.u32 2147483647, %v280
    %vm291 = vcmp.eq.f32.partialorder %v290, 8.507059e+37
    %v292 = vand.u32 %v280, 2147483648
    %v293 = vor.u32 1.1754944e-38, %v292
    %v294 = vsel %vm291, %v293, %v289
    %v295 = vmul.f32 %v273, %v294
    %296 = vst [vmem:[#allocation2] sm:$0xf] %v295
    // Predicated region
    $region30: #{tpu_custom_call.1} parent=1 // pred_check
      _
    $region31: #{tpu_custom_call.1} parent=1 // pred_check_branch
      %298 = sbr.rel (0) target = $region33
    $region32: #{tpu_custom_call.1} parent=1 // pred_region
      %300 = vsyncadd [#allocation3], 0
      %s302 = sshll.u32 [#allocation2], 4
      %s303 = int_to_ptr.vmem [resolvable:$true] %s302
      %s304 = sshll.u32 %s7, 4
      %s305 = int_to_ptr.hbm [resolvable:$true] %s304
      %307 = dma.vmem_to_hbm [thread:$0]  %s303, 64, %s305, [#allocation3]
    $region33: #{tpu_custom_call.1} parent=1 // pred_fallthru
      _
    // Predicated region
    $region34: #{tpu_custom_call.1} parent=1 // pred_check
      _
    $region35: #{tpu_custom_call.1} parent=1 // pred_check_branch
      %309 = sbr.rel (0) target = $region37
    $region36: #{tpu_custom_call.1} parent=1 // pred_region
      %311 = dma.done [#allocation3], 64
    $region37: #{tpu_custom_call.1} parent=1 // pred_fallthru
      _
    %312 = vsyncpa [#allocation3], 1

</llo_original>
